<compile_context>
chip_gen: v7x
topology: tpu7x:2x2x1
jax: 0.10.0
libtpu: 0.0.40
codegen_flags: <defaults>
</compile_context>

<pallas_src>
import functools

import jax
import jax.numpy as jnp
from jax import lax
from jax.experimental import pallas as pl
from jax.experimental.pallas import tpu as pltpu

_HP = 8  # sublane-aligned slot in the row-extended scratch where the tile starts


def _cmpswap(a, b):
    return jnp.minimum(a, b), jnp.maximum(a, b)


def _med3(a, b, c):
    return jnp.maximum(jnp.minimum(a, b), jnp.minimum(jnp.maximum(a, b), c))


def _sort3(a, b, c):
    a, b = _cmpswap(a, b)
    b, c = _cmpswap(b, c)
    a, b = _cmpswap(a, b)
    return a, b, c


def _round_up(v, m):
    return -(-v // m) * m


def _median_blur_kernel(mid_ref, top_ref, bot_ref, o_ref, ext_ref,
                        *, kh, kw, H, W, Th, S, T):
    ph, pw = (kh - 1) // 2, (kw - 1) // 2
    L = mid_ref.shape[-1]
    dtype = mid_ref.dtype
    t = pl.program_id(1)

    # ------------------------------------------------------------------
    # Assemble the row-halo'd tile in VMEM scratch:
    #   ext[_HP - ph : _HP)           ph rows above the tile (or zeros)
    #   ext[_HP      : _HP + Th)      the tile itself (sublane-aligned copy)
    #   ext[_HP + Th : _HP + Th + ph) ph rows below the tile (or zeros)
    # ------------------------------------------------------------------
    ext_ref[pl.ds(_HP, Th), :] = mid_ref[...]

    # Rows of a ragged last tile that lie below the image must read as zero
    # padding; only the first `ph` of them are ever used as taps.
    rem = H - (T - 1) * Th                 # valid rows in the last tile (static)
    nz = min(ph, Th - rem)
    if nz > 0:
        @pl.when(t == T - 1)
        def _():
            ext_ref[pl.ds(_HP + rem, nz), :] = jnp.zeros((nz, L), dtype)

    if ph > 0:
        if T == 1:
            # single row tile: both halos lie outside the image -> zeros
            ext_ref[pl.ds(_HP - ph, ph), :] = jnp.zeros((ph, L), dtype)
            ext_ref[pl.ds(_HP + Th, ph), :] = jnp.zeros((ph, L), dtype)
        else:
            @pl.when(t > 0)
            def _():
                ext_ref[pl.ds(_HP - ph, ph), :] = top_ref[pl.ds(8 - ph, ph), :]

            @pl.when(t == 0)
            def _():
                ext_ref[pl.ds(_HP - ph, ph), :] = jnp.zeros((ph, L), dtype)

            for j in range(ph):
                below = (t + 1) * Th + j   # global row index of this halo row

                @pl.when(below < H)
                def _(j=j):
                    ext_ref[pl.ds(_HP + Th + j, 1), :] = bot_ref[pl.ds(j, 1), :]

                @pl.when(below >= H)
                def _(j=j):
                    ext_ref[pl.ds(_HP + Th + j, 1), :] = jnp.zeros((1, L), dtype)

    # ------------------------------------------------------------------
    # Column-tap masks, hoisted out of the strip loop (the % W is skipped
    # entirely when channels are not folded onto the lane axis).
    # ------------------------------------------------------------------
    lane = lax.broadcasted_iota(jnp.int32, (S, L), 1)
    col = lane % W if L != W else lane
    col_ok = []
    for dj in range(kw):
        ox = dj - pw
        if ox == 0:
            col_ok.append(None)
        elif ox < 0:
            col_ok.append(col >= -ox)
        else:
            col_ok.append(col < W - ox)
    zero = jnp.zeros((), dtype)

    def column_taps(x):
        taps = []
        for dj in range(kw):
            ox = dj - pw
            if ox == 0:
                taps.append(x)
            else:
                taps.append(jnp.where(col_ok[dj], jnp.roll(x, -ox, axis=1), zero))
        return taps

    # ------------------------------------------------------------------
    # Strip loop: S output rows at a time so the kh*kw taps plus the
    # selection-network temporaries stay inside the vector register file.
    # TODO(synk): for very wide unfolded images (W >~ 2048) add lane tiling
    # inside the strip to bound vreg pressure further.
    # ------------------------------------------------------------------
    nstrip = Th // S

    def strip(si, carry):
        r0 = pl.multiple_of(si * S, S)
        # one sublane-aligned load covering every row tap of this strip
        blk = ext_ref[pl.ds(r0, S + 2 * _HP), :]

        def tap(di):
            lo = _HP - ph + di
            return blk[lo:lo + S]

        if kh == 3 and kw == 3:
            # median-of-9: sort each row triple, then take the median of
            # {max of minima, median of medians, min of maxima} -- 30 min/max
            # ops, written incrementally so only ~5 strip-sized values live.
            lo, me0, hi = _sort3(*column_taps(tap(0)))
            l1, me1, h1 = _sort3(*column_taps(tap(1)))
            lo = jnp.maximum(lo, l1)
            hi = jnp.minimum(hi, h1)
            l2, me2, h2 = _sort3(*column_taps(tap(2)))
            lo = jnp.maximum(lo, l2)
            hi = jnp.minimum(hi, h2)
            med = _med3(lo, _med3(me0, me1, me2), hi)
        else:
            # TODO(synk): pruned median-selection networks for 5x5 / 7x7; the
            # partial selection below keeps torch.median's semantics.
            vals = []
            for di in range(kh):
                vals.extend(column_taps(tap(di)))
            n = kh * kw
            m = (n - 1) // 2
            for end in range(n - 1, m - 1, -1):
                for j in range(end):
                    vals[j], vals[j + 1] = _cmpswap(vals[j], vals[j + 1])
            med = vals[m]

        o_ref[pl.ds(r0, S), :] = med.astype(o_ref.dtype)
        return carry

    lax.fori_loop(0, nstrip, strip, None)


def _choose_fold(bc, w, max_lanes=512):
    """How many channels to fold side-by-side onto the lane axis (W < 128)."""
    divisors = [d for d in range(1, bc + 1) if bc % d == 0]
    dense = [d for d in divisors if (d * w) % 128 == 0 and d * w <= max_lanes]
    if dense:
        return max(dense)          # largest lane-dense fold (unmasked stores)
    fits = [d for d in divisors if d * w <= max_lanes]
    return max(fits) if fits else 1


def median_blur(x, kernel_size=(3, 3)):
    """Median blur of an NCHW tensor; semantics match the PyTorch module."""
    B, C, H, W = x.shape
    kh, kw = kernel_size
    if kh % 2 == 0 or kw % 2 == 0:
        raise ValueError("only odd kernel sizes preserve the spatial shape")
    if (kh - 1) // 2 > _HP:
        raise NotImplementedError("kernel heights above 17 are not supported")

    BC = B * C
    esz = jnp.dtype(x.dtype).itemsize

    # Fold channels onto the lane axis only when W is narrower than a vreg;
    # for W >= 128 the host-side fold transpose would cost two extra HBM
    # passes for little gain.
    fold = _choose_fold(BC, W) if W < 128 else 1
    G = BC // fold
    L = fold * W

    # Strip height: ~4K elements per strip keeps taps + network temps in vregs
    # while amortizing loop overhead on narrow images.
    S = min(32, max(8, _round_up(-(-4096 // L), 8)))
    S = min(S, _round_up(H, 8))

    # Row-tile height: multiple of S, bounded so the ~5 tile-sized VMEM
    # buffers (2 in + 2 out pipeline buffers + halo'd scratch) stay well under
    # the scoped VMEM limit on every TPU generation (v7x: 64 MiB physical).
    max_block_elems = (16 * 1024 * 1024) // (5 * esz)
    max_th = max(S, (max_block_elems // L) // S * S)
    Th = min(_round_up(H, S), max_th)
    T = -(-H // Th)

    # Keep at least two grid entries so both v7x TensorCores get work.
    if G * T < 2 and H > S:
        Th = max(S, _round_up(-(-H // 2), S))
        T = -(-H // Th)

    if fold == 1:
        xf = x.reshape(BC, H, W)                       # free reshape, no copy
    else:
        xf = x.reshape(G, fold, H, W).transpose(0, 2, 1, 3).reshape(G, H, L)

    HB = 8 if T > 1 else min(8, H)       # halo windows (only read when T > 1)
    NBH = -(-H // HB)
    RH = Th // HB if T > 1 else 1

    kern = functools.partial(_median_blur_kernel, kh=kh, kw=kw, H=H, W=W,
                             Th=Th, S=S, T=T)
    out = pl.pallas_call(
        kern,
        out_shape=jax.ShapeDtypeStruct((G, H, L), x.dtype),
        grid=(G, T),
        in_specs=[
            # the row tile itself
            pl.BlockSpec((None, Th, L), lambda g, t: (g, t, 0)),
            # 8-row window just above the tile (clamped at the image top)
            pl.BlockSpec((None, HB, L),
                         lambda g, t: (g, jnp.maximum(t * RH - 1, 0), 0)),
            # 8-row window just below the tile (clamped at the image bottom)
            pl.BlockSpec((None, HB, L),
                         lambda g, t: (g, jnp.minimum((t + 1) * RH, NBH - 1), 0)),
        ],
        out_specs=pl.BlockSpec((None, Th, L), lambda g, t: (g, t, 0)),
        scratch_shapes=[pltpu.VMEM((Th + 2 * _HP, L), x.dtype)],
        compiler_params=pltpu.CompilerParams(
            dimension_semantics=("parallel", "parallel"),
            vmem_limit_bytes=32 * 1024 * 1024),
    )(xf, xf, xf)

    if fold == 1:
        return out.reshape(B, C, H, W)
    return out.reshape(G, H, fold, W).transpose(0, 2, 1, 3).reshape(B, C, H, W)


def _median_blur_ref(x, kernel_size=(3, 3)):
    """Pure-JAX reference replicating the PyTorch forward exactly."""
    B, C, H, W = x.shape
    kh, kw = kernel_size
    ph, pw = (kh - 1) // 2, (kw - 1) // 2
    xp = jnp.pad(x, ((0, 0), (0, 0), (ph, ph), (pw, pw)))
    patches = jnp.stack(
        [xp[:, :, di:di + H, dj:dj + W] for di in range(kh) for dj in range(kw)],
        axis=2,
    )  # (B, C, kh*kw, H, W)
    n = kh * kw
    return jnp.sort(patches, axis=2)[:, :, (n - 1) // 2]


if __name__ == "__main__":
    # NOTE: NaN propagation differs from torch.median (min/max network);
    # irrelevant for these finite test inputs.
    key = jax.random.PRNGKey(0)
    cases = [
        ((2, 4, 16, 16), (3, 3)),    # base case (lane-dense channel fold)
        ((1, 1, 80, 128), (3, 3)),   # multi-row-tile path (halo exchange)
        ((1, 3, 13, 20), (3, 3)),    # ragged H / non-lane-dense fold
        ((1, 2, 12, 16), (5, 5)),    # generic (non-3x3) median path
    ]
    for i, (shape, ks) in enumerate(cases):
        x = jax.random.uniform(jax.random.fold_in(key, i), shape,
                               dtype=jnp.float32)
        y = median_blur(x, kernel_size=ks)
        jax.block_until_ready(y)
        ref = _median_blur_ref(x, kernel_size=ks)
        assert y.shape == x.shape and y.dtype == x.dtype
        assert jnp.allclose(y, ref, atol=1e-6), f"mismatch for {shape} {ks}"

    print("KERNEL_OK")
</pallas_src>

<mosaic_0001>
module attributes {stable_mosaic.version = 11 : i64} {
  func.func @_median_blur_kernel(%arg0: i32, %arg1: i32, %arg2: memref<1x16x128xf32, #tpu.memory_space<vmem>>, %arg3: memref<1x8x128xf32, #tpu.memory_space<vmem>>, %arg4: memref<1x8x128xf32, #tpu.memory_space<vmem>>, %arg5: memref<1x16x128xf32, #tpu.memory_space<vmem>>, %arg6: memref<32x128xf32, #tpu.memory_space<vmem>>) attributes {dimension_semantics = [#tpu.dimension_semantics<parallel>, #tpu.dimension_semantics<parallel>], iteration_bounds = array<i64: 1, 1>, scalar_prefetch = 0 : i64, scratch_operands = 1 : i64, tpu.core_type = #tpu.core_type<tc>, window_params = [{transform_indices = @transform_0, window_bounds = array<i64: 1, 16, 128>}, {transform_indices = @transform_1, window_bounds = array<i64: 1, 8, 128>}, {transform_indices = @transform_2, window_bounds = array<i64: 1, 8, 128>}, {transform_indices = @transform_3, window_bounds = array<i64: 1, 16, 128>}]} {
    %c0 = arith.constant 0 : index
    %c0_0 = arith.constant 0 : index
    %c0_1 = arith.constant 0 : index
    %0 = vector.load %arg2[%c0, %c0_0, %c0_1] : memref<1x16x128xf32, #tpu.memory_space<vmem>>, vector<1x16x128xf32>
    %1 = vector.shape_cast %0 : vector<1x16x128xf32> to vector<16x128xf32>
    %c8 = arith.constant 8 : index
    %c0_2 = arith.constant 0 : index
    %2 = vector.load %arg6[%c8, %c0_2] : memref<32x128xf32, #tpu.memory_space<vmem>>, vector<16x128xf32>
    tpu.vector_store %arg6[%c8, %c0_2], %1 {strides = array<i32>} : memref<32x128xf32, #tpu.memory_space<vmem>>, vector<16x128xf32>,
    %cst = arith.constant 0.000000e+00 : f32
    %3 = vector.broadcast %cst : f32 to vector<1x128xf32>
    %c7 = arith.constant 7 : index
    %c0_3 = arith.constant 0 : index
    %4 = vector.load %arg6[%c7, %c0_3] : memref<32x128xf32, #tpu.memory_space<vmem>>, vector<1x128xf32>
    tpu.vector_store %arg6[%c7, %c0_3], %3 {strides = array<i32>} : memref<32x128xf32, #tpu.memory_space<vmem>>, vector<1x128xf32>,
    %cst_4 = arith.constant 0.000000e+00 : f32
    %5 = vector.broadcast %cst_4 : f32 to vector<1x128xf32>
    %c24 = arith.constant 24 : index
    %c0_5 = arith.constant 0 : index
    %6 = vector.load %arg6[%c24, %c0_5] : memref<32x128xf32, #tpu.memory_space<vmem>>, vector<1x128xf32>
    tpu.vector_store %arg6[%c24, %c0_5], %5 {strides = array<i32>} : memref<32x128xf32, #tpu.memory_space<vmem>>, vector<1x128xf32>,
    %7 = tpu.iota {dimensions = array<i32: 1>} : vector<16x128xi32>
    %c16_i32 = arith.constant 16 : i32
    %c0_i32 = arith.constant 0 : i32
    %8 = arith.cmpi eq, %c16_i32, %c0_i32 : i32
    %c1_i32 = arith.constant 1 : i32
    %9 = arith.select %8, %c1_i32, %c16_i32 : i32
    %10 = vector.broadcast %9 : i32 to vector<16x128xi32>
    %11 = arith.remsi %7, %10 : vector<16x128xi32>
    %c0_i32_6 = arith.constant 0 : i32
    %12 = vector.broadcast %c0_i32_6 : i32 to vector<16x128xi32>
    %13 = arith.cmpi ne, %11, %12 : vector<16x128xi32>
    %c0_i32_7 = arith.constant 0 : i32
    %14 = vector.broadcast %c0_i32_7 : i32 to vector<16x128xi32>
    %15 = arith.cmpi slt, %11, %14 : vector<16x128xi32>
    %c0_i32_8 = arith.constant 0 : i32
    %16 = arith.cmpi slt, %9, %c0_i32_8 : i32
    %17 = vector.broadcast %16 : i1 to vector<16x128xi1>
    %18 = vector.broadcast %17 : vector<16x128xi1> to vector<16x128xi1>
    %19 = arith.xori %15, %18 : vector<16x128xi1>
    %20 = arith.andi %19, %13 : vector<16x128xi1>
    %21 = vector.broadcast %9 : i32 to vector<16x128xi32>
    %22 = arith.addi %11, %21 : vector<16x128xi32>
    %23 = arith.select %20, %22, %11 : vector<16x128xi1>, vector<16x128xi32>
    %c1_i32_9 = arith.constant 1 : i32
    %24 = vector.broadcast %c1_i32_9 : i32 to vector<16x128xi32>
    %25 = arith.cmpi sge, %23, %24 : vector<16x128xi32>
    %c15_i32 = arith.constant 15 : i32
    %26 = vector.broadcast %c15_i32 : i32 to vector<16x128xi32>
    %27 = arith.cmpi slt, %23, %26 : vector<16x128xi32>
    %cst_10 = arith.constant 0.000000e+00 : f32
    %c0_i32_11 = arith.constant 0 : i32
    %c16_i32_12 = arith.constant 16 : i32
    %28 = arith.muli %c0_i32_11, %c16_i32_12 : i32
    %29 = tpu.assume_multiple %28, 16 : i32
    %30 = arith.index_cast %29 : i32 to index
    %c0_13 = arith.constant 0 : index
    %31 = vector.load %arg6[%30, %c0_13] : memref<32x128xf32, #tpu.memory_space<vmem>>, vector<32x128xf32>
    %32 = vector.extract_strided_slice %31 {offsets = [7, 0], sizes = [16, 128], strides = [1, 1]} : vector<32x128xf32> to vector<16x128xf32>
    %33 = vector.extract_strided_slice %32 {offsets = [0, 127], sizes = [16, 1], strides = [1, 1]} : vector<16x128xf32> to vector<16x1xf32>
    %34 = vector.extract_strided_slice %32 {offsets = [0, 0], sizes = [16, 127], strides = [1, 1]} : vector<16x128xf32> to vector<16x127xf32>
    %35 = tpu.concatenate %33, %34 in 1 : vector<16x1xf32>, vector<16x127xf32> -> vector<16x128xf32>
    %36 = vector.broadcast %cst_10 : f32 to vector<16x128xf32>
    %37 = arith.select %25, %35, %36 : vector<16x128xi1>, vector<16x128xf32>
    %38 = vector.extract_strided_slice %32 {offsets = [0, 1], sizes = [16, 127], strides = [1, 1]} : vector<16x128xf32> to vector<16x127xf32>
    %39 = vector.extract_strided_slice %32 {offsets = [0, 0], sizes = [16, 1], strides = [1, 1]} : vector<16x128xf32> to vector<16x1xf32>
    %40 = tpu.concatenate %38, %39 in 1 : vector<16x127xf32>, vector<16x1xf32> -> vector<16x128xf32>
    %41 = vector.broadcast %cst_10 : f32 to vector<16x128xf32>
    %42 = arith.select %27, %40, %41 : vector<16x128xi1>, vector<16x128xf32>
    %43 = arith.minimumf %37, %32 : vector<16x128xf32>
    %44 = arith.maximumf %37, %32 : vector<16x128xf32>
    %45 = arith.minimumf %44, %42 : vector<16x128xf32>
    %46 = arith.maximumf %44, %42 : vector<16x128xf32>
    %47 = arith.minimumf %43, %45 : vector<16x128xf32>
    %48 = arith.maximumf %43, %45 : vector<16x128xf32>
    %49 = vector.extract_strided_slice %31 {offsets = [8, 0], sizes = [16, 128], strides = [1, 1]} : vector<32x128xf32> to vector<16x128xf32>
    %50 = vector.extract_strided_slice %49 {offsets = [0, 127], sizes = [16, 1], strides = [1, 1]} : vector<16x128xf32> to vector<16x1xf32>
    %51 = vector.extract_strided_slice %49 {offsets = [0, 0], sizes = [16, 127], strides = [1, 1]} : vector<16x128xf32> to vector<16x127xf32>
    %52 = tpu.concatenate %50, %51 in 1 : vector<16x1xf32>, vector<16x127xf32> -> vector<16x128xf32>
    %53 = vector.broadcast %cst_10 : f32 to vector<16x128xf32>
    %54 = arith.select %25, %52, %53 : vector<16x128xi1>, vector<16x128xf32>
    %55 = vector.extract_strided_slice %49 {offsets = [0, 1], sizes = [16, 127], strides = [1, 1]} : vector<16x128xf32> to vector<16x127xf32>
    %56 = vector.extract_strided_slice %49 {offsets = [0, 0], sizes = [16, 1], strides = [1, 1]} : vector<16x128xf32> to vector<16x1xf32>
    %57 = tpu.concatenate %55, %56 in 1 : vector<16x127xf32>, vector<16x1xf32> -> vector<16x128xf32>
    %58 = vector.broadcast %cst_10 : f32 to vector<16x128xf32>
    %59 = arith.select %27, %57, %58 : vector<16x128xi1>, vector<16x128xf32>
    %60 = arith.minimumf %54, %49 : vector<16x128xf32>
    %61 = arith.maximumf %54, %49 : vector<16x128xf32>
    %62 = arith.minimumf %61, %59 : vector<16x128xf32>
    %63 = arith.maximumf %61, %59 : vector<16x128xf32>
    %64 = arith.minimumf %60, %62 : vector<16x128xf32>
    %65 = arith.maximumf %60, %62 : vector<16x128xf32>
    %66 = arith.maximumf %47, %64 : vector<16x128xf32>
    %67 = arith.minimumf %46, %63 : vector<16x128xf32>
    %68 = vector.extract_strided_slice %31 {offsets = [9, 0], sizes = [16, 128], strides = [1, 1]} : vector<32x128xf32> to vector<16x128xf32>
    %69 = vector.extract_strided_slice %68 {offsets = [0, 127], sizes = [16, 1], strides = [1, 1]} : vector<16x128xf32> to vector<16x1xf32>
    %70 = vector.extract_strided_slice %68 {offsets = [0, 0], sizes = [16, 127], strides = [1, 1]} : vector<16x128xf32> to vector<16x127xf32>
    %71 = tpu.concatenate %69, %70 in 1 : vector<16x1xf32>, vector<16x127xf32> -> vector<16x128xf32>
    %72 = vector.broadcast %cst_10 : f32 to vector<16x128xf32>
    %73 = arith.select %25, %71, %72 : vector<16x128xi1>, vector<16x128xf32>
    %74 = vector.extract_strided_slice %68 {offsets = [0, 1], sizes = [16, 127], strides = [1, 1]} : vector<16x128xf32> to vector<16x127xf32>
    %75 = vector.extract_strided_slice %68 {offsets = [0, 0], sizes = [16, 1], strides = [1, 1]} : vector<16x128xf32> to vector<16x1xf32>
    %76 = tpu.concatenate %74, %75 in 1 : vector<16x127xf32>, vector<16x1xf32> -> vector<16x128xf32>
    %77 = vector.broadcast %cst_10 : f32 to vector<16x128xf32>
    %78 = arith.select %27, %76, %77 : vector<16x128xi1>, vector<16x128xf32>
    %79 = arith.minimumf %73, %68 : vector<16x128xf32>
    %80 = arith.maximumf %73, %68 : vector<16x128xf32>
    %81 = arith.minimumf %80, %78 : vector<16x128xf32>
    %82 = arith.maximumf %80, %78 : vector<16x128xf32>
    %83 = arith.minimumf %79, %81 : vector<16x128xf32>
    %84 = arith.maximumf %79, %81 : vector<16x128xf32>
    %85 = arith.maximumf %66, %83 : vector<16x128xf32>
    %86 = arith.minimumf %67, %82 : vector<16x128xf32>
    %87 = arith.minimumf %48, %65 : vector<16x128xf32>
    %88 = arith.maximumf %48, %65 : vector<16x128xf32>
    %89 = arith.minimumf %88, %84 : vector<16x128xf32>
    %90 = arith.maximumf %87, %89 : vector<16x128xf32>
    %91 = arith.minimumf %85, %90 : vector<16x128xf32>
    %92 = arith.maximumf %85, %90 : vector<16x128xf32>
    %93 = arith.minimumf %92, %86 : vector<16x128xf32>
    %94 = arith.maximumf %91, %93 : vector<16x128xf32>
    %c0_14 = arith.constant 0 : index
    %95 = arith.index_cast %29 : i32 to index
    %c0_15 = arith.constant 0 : index
    %96 = vector.load %arg5[%c0_14, %95, %c0_15] : memref<1x16x128xf32, #tpu.memory_space<vmem>>, vector<1x16x128xf32>
    %97 = vector.shape_cast %96 : vector<1x16x128xf32> to vector<16x128xf32>
    %98 = vector.shape_cast %94 : vector<16x128xf32> to vector<1x16x128xf32>
    tpu.vector_store %arg5[%c0_14, %95, %c0_15], %98 {strides = array<i32>} : memref<1x16x128xf32, #tpu.memory_space<vmem>>, vector<1x16x128xf32>,
    %c1_i32_16 = arith.constant 1 : i32
    return
  }
  func.func @transform_0(%arg0: i32, %arg1: i32) -> (i32, i32, i32) {
    %c0_i32 = arith.constant 0 : i32
    %c0_i32_0 = arith.constant 0 : i32
    return %arg0, %arg1, %c0_i32 : i32, i32, i32
  }
  func.func @transform_1(%arg0: i32, %arg1: i32) -> (i32, i32, i32) {
    %c1_i32 = arith.constant 1 : i32
    %0 = arith.muli %arg1, %c1_i32 : i32
    %c1_i32_0 = arith.constant 1 : i32
    %1 = arith.subi %0, %c1_i32_0 : i32
    %c0_i32 = arith.constant 0 : i32
    %2 = arith.maxsi %1, %c0_i32 : i32
    %c0_i32_1 = arith.constant 0 : i32
    %c0_i32_2 = arith.constant 0 : i32
    return %arg0, %2, %c0_i32_1 : i32, i32, i32
  }
  func.func @transform_2(%arg0: i32, %arg1: i32) -> (i32, i32, i32) {
    %c1_i32 = arith.constant 1 : i32
    %0 = arith.addi %arg1, %c1_i32 : i32
    %c1_i32_0 = arith.constant 1 : i32
    %1 = arith.muli %0, %c1_i32_0 : i32
    %c1_i32_1 = arith.constant 1 : i32
    %2 = arith.minsi %1, %c1_i32_1 : i32
    %c0_i32 = arith.constant 0 : i32
    %c0_i32_2 = arith.constant 0 : i32
    return %arg0, %2, %c0_i32 : i32, i32, i32
  }
  func.func @transform_3(%arg0: i32, %arg1: i32) -> (i32, i32, i32) {
    %c0_i32 = arith.constant 0 : i32
    %c0_i32_0 = arith.constant 0 : i32
    return %arg0, %arg1, %c0_i32 : i32, i32, i32
  }
}

</mosaic_0001>

<llo_original>
// kernel: tpu_custom_call.1
$region0: #{tpu_custom_call.1}
  #allocation0 [shape = 'u32[]', space=smem, size = 0x4, offset = 0x4, fixed_abs, tag = 'smem constant byte address 0x4 - core index']
  #allocation1 [shape = 'u32[144,128]{1,0:T(1,128)}', space=vmem, size = 0x12000, scoped, tag = 'internal scratch']
  #allocation2 [shape = 'f32[32,128]{1,0:T(8,128)}', space=vmem, size = 0x4000, scoped, tag = 'scratch operand']
  %s0 = inlined_call_operand.hbm [shape: f32[1,16,128], index: 0, kind: input, shape index: {}]
  %s1 = inlined_call_operand.hbm [shape: f32[1,16,128], index: 1, kind: input, shape index: {}]
  %s2 = inlined_call_operand.hbm [shape: f32[1,16,128], index: 2, kind: input, shape index: {}]
  %s3 = inlined_call_operand.hbm [shape: f32[1,16,128], index: 3, kind: output, shape index: {}]
  %s4 = sld [smem:[#allocation0]]
  $region34: #{tpu_custom_call.1} parent=0
    _
  %s6 = ssub.s32 1, %s4
  %s7 = scalar_select 0, %s6, %s4
  $region1: #{tpu_custom_call.1} parent=0
    #allocation3 [shape = 'u8[8192]{0}', space=vmem, size = 0x2000, scoped, tag = 'input window, operand 0, single buffered']
    #allocation4 [shape = 's32[1]{0}', space=sflag, size = 0x4, scoped, tag = 'scoped memory for tpu_custom_call.1']
    #allocation5 [shape = 's32[1]{0}', space=sflag, size = 0x4, scoped, tag = 'scoped memory for tpu_custom_call.1']
    #allocation6 [shape = 'u8[4096]{0}', space=vmem, size = 0x1000, scoped, tag = 'input window, operand 1, single buffered']
    #allocation7 [shape = 's32[1]{0}', space=sflag, size = 0x4, scoped, tag = 'scoped memory for tpu_custom_call.1']
    #allocation8 [shape = 'u8[4096]{0}', space=vmem, size = 0x1000, scoped, tag = 'input window, operand 2, single buffered']
    #allocation9 [shape = 'u8[8192]{0}', space=vmem, size = 0x2000, scoped, tag = 'output window, operand 0, single buffered']
    %8 = vsyncpa [#allocation4], 0
    %9 = vsyncpa [#allocation7], 0
    %10 = vsyncpa [#allocation5], 0
    // Predicated region
    $region2: #{tpu_custom_call.1} parent=1 // pred_check
      _
    $region3: #{tpu_custom_call.1} parent=1 // pred_check_branch
      %12 = sbr.rel (0) target = $region5
    $region4: #{tpu_custom_call.1} parent=1 // pred_region
      %s14 = ssub.s32 256, 256
      %15 = vsyncadd [#allocation4], %s14
      %s16 = sshll.u32 [#allocation3], 4
      %s17 = int_to_ptr.vmem [resolvable:$true] %s16
      %22 = dma.hbm_to_vmem [thread:$0]  %s0, 256, %s17, [#allocation4], 128, 128, 8
    $region5: #{tpu_custom_call.1} parent=1 // pred_fallthru
      _
    // Predicated region
    $region6: #{tpu_custom_call.1} parent=1 // pred_check
      _
    $region7: #{tpu_custom_call.1} parent=1 // pred_check_branch
      %24 = sbr.rel (0) target = $region9
    $region8: #{tpu_custom_call.1} parent=1 // pred_region
      %s25 = ssub.s32 0, 1
      %p26 = scmp.gt.s32.totalorder %s25, 0
      %s27 = scalar_select %p26, %s25, 0
      %s29 = ssub.s32 128, 128
      %30 = vsyncadd [#allocation7], %s29
      %s31 = smul.addr %s27, 128
      %s32 = scalar_lea.hbm %s1, %s31
      %s34 = sshll.u32 [#allocation6], 4
      %s35 = int_to_ptr.vmem [resolvable:$true] %s34
      %37 = dma.hbm_to_vmem [thread:$0]  %s32, 128, %s35, [#allocation7]
    $region9: #{tpu_custom_call.1} parent=1 // pred_fallthru
      _
    // Predicated region
    $region10: #{tpu_custom_call.1} parent=1 // pred_check
      _
    $region11: #{tpu_custom_call.1} parent=1 // pred_check_branch
      %39 = sbr.rel (0) target = $region13
    $region12: #{tpu_custom_call.1} parent=1 // pred_region
      %s40 = sadd.s32 0, 1
      %p41 = scmp.lt.s32.totalorder %s40, 1
      %s42 = scalar_select %p41, %s40, 1
      %s44 = ssub.s32 128, 128
      %45 = vsyncadd [#allocation7], %s44
      %s46 = smul.addr %s42, 128
      %s47 = scalar_lea.hbm %s2, %s46
      %s49 = sshll.u32 [#allocation8], 4
      %s50 = int_to_ptr.vmem [resolvable:$true] %s49
      %52 = dma.hbm_to_vmem [thread:$0]  %s47, 128, %s50, [#allocation7]
    $region13: #{tpu_custom_call.1} parent=1 // pred_fallthru
      _
    // Predicated region
    $region14: #{tpu_custom_call.1} parent=1 // pred_check
      _
    $region15: #{tpu_custom_call.1} parent=1 // pred_check_branch
      %54 = sbr.rel (0) target = $region17
    $region16: #{tpu_custom_call.1} parent=1 // pred_region
      %55 = dma.done [#allocation4], 256
    $region17: #{tpu_custom_call.1} parent=1 // pred_fallthru
      _
    // Predicated region
    $region18: #{tpu_custom_call.1} parent=1 // pred_check
      _
    $region19: #{tpu_custom_call.1} parent=1 // pred_check_branch
      %57 = sbr.rel (0) target = $region21
    $region20: #{tpu_custom_call.1} parent=1 // pred_region
      %58 = dma.done [#allocation7], 128
    $region21: #{tpu_custom_call.1} parent=1 // pred_fallthru
      _
    // Predicated region
    $region22: #{tpu_custom_call.1} parent=1 // pred_check
      _
    $region23: #{tpu_custom_call.1} parent=1 // pred_check_branch
      %60 = sbr.rel (0) target = $region25
    $region24: #{tpu_custom_call.1} parent=1 // pred_region
      %61 = dma.done [#allocation7], 128
    $region25: #{tpu_custom_call.1} parent=1 // pred_fallthru
      _
    %s62 = ssub.s32 0, 1
    %p63 = scmp.gt.s32.totalorder %s62, 0
    %s64 = scalar_select %p63, %s62, 0
    %s65 = sadd.s32 0, 1
    %p66 = scmp.lt.s32.totalorder %s65, 1
    %s67 = scalar_select %p66, %s65, 1
    %v68 = vld [vmem:[#allocation3] sm:$0xff]
    %v69 = vld [vmem:[#allocation3 + $0x8] sm:$0xff]
    %70 = vst [vmem:[#allocation2 + $0x8] sm:$0xff] %v68
    %71 = vst [vmem:[#allocation2 + $0x10] sm:$0xff] %v69
    %72 = vst [vmem:[#allocation2 + $0x7] sm:$0x1] 0.0
    %73 = vst [vmem:[#allocation2 + $0x18] sm:$0x1] 0.0
    %v74 = vlaneseq
    %v75 = vand.u32 %v74, 127
    %vm76 = vcmp.lt.s32.totalorder %v75, 0
    %v77 = vsub.s32 0, %v75
    %v78 = vsel %vm76, %v77, %v75
    %v79 = vshrl.u32 %v78, 4
    %v80 = vand.u32 %v78, 15
    %v81 = vsub.s32 0, %v80
    %v82 = vsel %vm76, %v81, %v80
    %vm83 = vcmp.ne.s32.totalorder %v82, 0
    %vm84 = vcmp.lt.s32.totalorder %v82, 0
    %vm85 = vmand %vm84, %vm83
    %v86 = vadd.s32 %v82, 16
    %v87 = vsel %vm85, %v86, %v82
    %vm88 = vcmp.ge.s32.totalorder %v87, 1
    %vm89 = vcmp.lt.s32.totalorder %v87, 15
    %v90 = vld [vmem:[#allocation2] sm:$0xff]
    %v91 = vld [vmem:[#allocation2 + $0x8] sm:$0xff]
    %v92 = vld [vmem:[#allocation2 + $0x10] sm:$0xff]
    %v93 = vld [vmem:[#allocation2 + $0x18] sm:$0xff]
    %97 = vrot.lane.b32.xlu0 %v90, 1
    %v98 = vpop.permute.xlu0 %97
    %99 = vrot.lane.b32.xlu0 %v91, 1
    %v100 = vpop.permute.xlu0 %99
    %101 = vrot.lane.b32.xlu0 %v92, 1
    %v102 = vpop.permute.xlu0 %101
    %v106 = vsel %vm88, %v98, 0.0
    %v107 = vsel %vm88, %v100, 0.0
    %v108 = vsel %vm88, %v102, 0.0
    %109 = vrot.lane.b32.xlu0 %v90, 127
    %v110 = vpop.permute.xlu0 %109
    %111 = vrot.lane.b32.xlu0 %v91, 127
    %v112 = vpop.permute.xlu0 %111
    %113 = vrot.lane.b32.xlu0 %v92, 127
    %v114 = vpop.permute.xlu0 %113
    %v118 = vsel %vm89, %v110, 0.0
    %v119 = vsel %vm89, %v112, 0.0
    %v120 = vsel %vm89, %v114, 0.0
    %v121 = vmin.f32 %v106, %v90
    %v122 = vmin.f32 %v107, %v91
    %v123 = vmin.f32 %v108, %v92
    %v124 = vmax.f32 %v106, %v90
    %v125 = vmax.f32 %v107, %v91
    %v126 = vmax.f32 %v108, %v92
    %v127 = vmin.f32 %v124, %v118
    %v128 = vmin.f32 %v125, %v119
    %v129 = vmin.f32 %v126, %v120
    %v130 = vmax.f32 %v124, %v118
    %v131 = vmax.f32 %v125, %v119
    %v132 = vmax.f32 %v126, %v120
    %v133 = vmin.f32 %v121, %v127
    %v134 = vmin.f32 %v122, %v128
    %v135 = vmin.f32 %v123, %v129
    %v136 = vmax.f32 %v121, %v127
    %v137 = vmax.f32 %v122, %v128
    %v138 = vmax.f32 %v123, %v129
    %vm141 = vcmask 1046528
    %v142 = vrot.slane %v134, 1
    %v143 = vrot.slane %v135, 1
    %v144 = vsel %vm141, %v142, %v143
    %v148 = vmax.f32 %v133, %v142
    %v149 = vmax.f32 %v134, %v144
    %v150 = vmax.f32 %v135, %v143
    %v153 = vrot.slane %v131, 1
    %v154 = vrot.slane %v132, 1
    %v155 = vsel %vm141, %v153, %v154
    %v159 = vmin.f32 %v130, %v153
    %v160 = vmin.f32 %v131, %v155
    %v161 = vmin.f32 %v132, %v154
    %163 = vrot.lane.b32.xlu0 %v93, 1
    %v164 = vpop.permute.xlu0 %163
    %v166 = vsel %vm88, %v164, 0.0
    %167 = vrot.lane.b32.xlu0 %v93, 127
    %v168 = vpop.permute.xlu0 %167
    %v170 = vsel %vm89, %v168, 0.0
    %v171 = vmin.f32 %v166, %v93
    %v172 = vmax.f32 %v166, %v93
    %v173 = vmin.f32 %v172, %v170
    %v174 = vmax.f32 %v172, %v170
    %v175 = vmin.f32 %v171, %v173
    %v176 = vmax.f32 %v171, %v173
    %vm178 = vcmask 1045504
    %v179 = vrot.slane %v134, 2
    %v180 = vrot.slane %v135, 2
    %v181 = vsel %vm178, %v179, %v180
    %v182 = vrot.slane %v175, 2
    %v183 = vsel %vm178, %v180, %v182
    %v187 = vmax.f32 %v148, %v179
    %v188 = vmax.f32 %v149, %v181
    %v189 = vmax.f32 %v150, %v183
    %v191 = vrot.slane %v131, 2
    %v192 = vrot.slane %v132, 2
    %v193 = vsel %vm178, %v191, %v192
    %v194 = vrot.slane %v174, 2
    %v195 = vsel %vm178, %v192, %v194
    %v199 = vmin.f32 %v159, %v191
    %v200 = vmin.f32 %v160, %v193
    %v201 = vmin.f32 %v161, %v195
    %v204 = vrot.slane %v137, 1
    %v205 = vrot.slane %v138, 1
    %v206 = vsel %vm141, %v204, %v205
    %v210 = vmin.f32 %v136, %v204
    %v211 = vmin.f32 %v137, %v206
    %v212 = vmin.f32 %v138, %v205
    %v213 = vmax.f32 %v136, %v204
    %v214 = vmax.f32 %v137, %v206
    %v215 = vmax.f32 %v138, %v205
    %v217 = vrot.slane %v137, 2
    %v218 = vrot.slane %v138, 2
    %v219 = vsel %vm178, %v217, %v218
    %v220 = vrot.slane %v176, 2
    %v221 = vsel %vm178, %v218, %v220
    %v225 = vmin.f32 %v213, %v217
    %v226 = vmin.f32 %v214, %v219
    %v227 = vmin.f32 %v215, %v221
    %v228 = vmax.f32 %v210, %v225
    %v229 = vmax.f32 %v211, %v226
    %v230 = vmax.f32 %v212, %v227
    %v231 = vmin.f32 %v187, %v228
    %v232 = vmin.f32 %v188, %v229
    %v233 = vmin.f32 %v189, %v230
    %v234 = vmax.f32 %v187, %v228
    %v235 = vmax.f32 %v188, %v229
    %v236 = vmax.f32 %v189, %v230
    %v237 = vmin.f32 %v234, %v199
    %v238 = vmin.f32 %v235, %v200
    %v239 = vmin.f32 %v236, %v201
    %v240 = vmax.f32 %v231, %v237
    %v241 = vmax.f32 %v232, %v238
    %v242 = vmax.f32 %v233, %v239
    %243 = vst [vmem:[#allocation9 - $0x7] sm:$0x80] %v240
    %244 = vst [vmem:[#allocation9 + $0x1] sm:$0xff] %v241
    %245 = vst [vmem:[#allocation9 + $0x9] sm:$0x7f] %v242
    // Predicated region
    $region26: #{tpu_custom_call.1} parent=1 // pred_check
      _
    $region27: #{tpu_custom_call.1} parent=1 // pred_check_branch
      %247 = sbr.rel (0) target = $region29
    $region28: #{tpu_custom_call.1} parent=1 // pred_region
      %s249 = ssub.s32 256, 256
      %250 = vsyncadd [#allocation5], %s249
      %s251 = sshll.u32 [#allocation9], 4
      %s252 = int_to_ptr.vmem [resolvable:$true] %s251
      %257 = dma.vmem_to_hbm [thread:$0]  %s252, 256, %s3, [#allocation5], 128, 128, 8
    $region29: #{tpu_custom_call.1} parent=1 // pred_fallthru
      _
    // Predicated region
    $region30: #{tpu_custom_call.1} parent=1 // pred_check
      _
    $region31: #{tpu_custom_call.1} parent=1 // pred_check_branch
      %259 = sbr.rel (0) target = $region33
    $region32: #{tpu_custom_call.1} parent=1 // pred_region
      %260 = dma.done [#allocation5], 256
    $region33: #{tpu_custom_call.1} parent=1 // pred_fallthru
      _
    %261 = vsyncpa [#allocation4], 1
    %262 = vsyncpa [#allocation7], 1
    %263 = vsyncpa [#allocation5], 1

</llo_original>
